<compile_context>
chip_gen: v7x
topology: tpu7x:2x2x1
jax: 0.10.0
libtpu: 0.0.40
codegen_flags: <defaults>
</compile_context>

<pallas_src>
import jax
import jax.numpy as jnp
from jax.experimental import pallas as pl
from jax.experimental.pallas import tpu as pltpu


# ----------------------------- kernel -----------------------------

def annot_embed_kernel(seq_ref, feat_ref, nucl_ref, pbs_ref, rt_ref, out_ref):
    # seq_ref : (TB, L)  int32   nucleotide ids in [0, 6)
    # feat_ref: (TB, 2)  float32 col0 = pbs_feat, col1 = rt_feat
    # nucl_ref: (6, D)   float32 nucl table at lane offset 0, zeros elsewhere
    # pbs_ref : (2, D)   float32 pbs table at lane offset nucl_dim, zeros elsewhere
    # rt_ref  : (2, D)   float32 rt table at lane offset nucl_dim+spec_dim, zeros elsewhere
    # out_ref : (TB, L, D) float32
    TB, L = seq_ref.shape
    D = out_ref.shape[-1]

    # Hoist the id broadcast once to full output lane width.
    ids = jnp.broadcast_to(seq_ref[...][:, :, None], (TB, L, D))      # (TB, L, D) int32

    # Nucleotide embedding: 6-way VPU select chain at full lane width.
    # Rows already sit at their concat lane offset; out-of-range ids (never produced
    # by the model, only by stale reads in an overhanging last block) fall to zero.
    acc = jnp.zeros((TB, L, D), jnp.float32)
    for k in range(6):
        acc = jnp.where(ids == k, nucl_ref[k:k + 1, :].reshape(1, 1, D), acc)

    # pbs / rt: threshold at 0.5, per-sample row select, broadcast over L.
    feats = feat_ref[...]                                             # (TB, 2)
    pbs_pred = (feats[:, 0:1] > 0.5).reshape(TB, 1, 1)
    rt_pred = (feats[:, 1:2] > 0.5).reshape(TB, 1, 1)
    p = jnp.where(pbs_pred, pbs_ref[1:2, :].reshape(1, 1, D),
                  pbs_ref[0:1, :].reshape(1, 1, D))                   # (TB, 1, D)
    r = jnp.where(rt_pred, rt_ref[1:2, :].reshape(1, 1, D),
                  rt_ref[0:1, :].reshape(1, 1, D))                    # (TB, 1, D)

    # Disjoint lane ranges -> "concatenation" is an add; ONE full-width store.
    out_ref[...] = acc + p + r


# ----------------------------- wrapper -----------------------------

def _round_up(x, m):
    return ((x + m - 1) // m) * m


def _vmem_working_set_bytes(tb, L, D):
    """Padded, double-buffered VMEM bytes for the pipeline buffers of one grid step."""
    out_buf = tb * _round_up(L, 8) * _round_up(D, 128) * 4
    seq_buf = _round_up(tb, 8) * _round_up(L, 128) * 4
    feat_buf = _round_up(tb, 8) * 128 * 4
    tbl_buf = (8 + 8 + 8) * _round_up(D, 128) * 4        # (6,D),(2,D),(2,D) sublane-padded
    return 2 * (out_buf + seq_buf + feat_buf + tbl_buf)  # x2: double-buffered


def _choose_batch_tile(B, L, D, *, pipeline_budget_bytes=12 << 20):
    """Pick batch rows per grid step with honest (lane-padded, double-buffered) accounting.

    Per pipeline buffer, one batch row costs the padded out slab plus the padded seq
    and feature rows. The budget keeps double-buffered in+out comfortably under every
    generation's scoped-VMEM default while giving multi-MiB out tiles (amortizes the
    ~0.35us/step fixed cost; ~2-4 MiB already saturates v5e/v6e HBM, v7x benefits from
    the larger tiles too).
    """
    out_row = _round_up(L, 8) * _round_up(D, 128) * 4
    in_row = _round_up(L, 128) * 4 + 128 * 4
    per_row = max(1, out_row + in_row)
    rows_by_budget = max(1, (pipeline_budget_bytes // 2) // per_row)
    if rows_by_budget >= B:
        return B
    tb = max(8, (rows_by_budget // 8) * 8)                # sublane-aligned when tiling
    # Best effort: even number of grid steps so v7x's two TensorCores both stay busy.
    grid = pl.cdiv(B, tb)
    if grid > 1 and grid % 2 == 1:
        tb_even = max(8, _round_up(pl.cdiv(B, grid + 1), 8))
        if tb_even < B and pl.cdiv(B, tb_even) % 2 == 0:
            tb = tb_even
    return tb


def _lane_offset_tables(nucl_tbl, pbs_tbl, rt_tbl):
    """Place each table's rows at their output (concat) lane offsets, zeros elsewhere."""
    nucl_dim = nucl_tbl.shape[1]
    spec_dim = pbs_tbl.shape[1]
    D = nucl_dim + 2 * spec_dim
    nucl_w = jnp.zeros((6, D), jnp.float32).at[:, :nucl_dim].set(
        nucl_tbl.astype(jnp.float32))
    pbs_w = jnp.zeros((2, D), jnp.float32).at[:, nucl_dim:nucl_dim + spec_dim].set(
        pbs_tbl.astype(jnp.float32))
    rt_w = jnp.zeros((2, D), jnp.float32).at[:, nucl_dim + spec_dim:].set(
        rt_tbl.astype(jnp.float32))
    return nucl_w, pbs_w, rt_w


def annot_embedder(seq, pbs_feat, rt_feat, nucl_tbl, pbs_tbl, rt_tbl, *, tb=None):
    B, L = seq.shape
    nucl_dim = nucl_tbl.shape[1]
    spec_dim = pbs_tbl.shape[1]
    D = nucl_dim + 2 * spec_dim

    if tb is None:
        tb = _choose_batch_tile(B, L, D)
    if tb >= B:
        tb = B
    else:
        tb = max(8, (tb // 8) * 8)     # keep second-to-last block dim sublane-aligned
        if tb >= B:
            tb = B
    grid = (pl.cdiv(B, tb),)

    seq_i = seq.astype(jnp.int32)                                       # (B, L)
    feats = jnp.stack([pbs_feat, rt_feat], axis=-1).astype(jnp.float32)  # (B, 2)
    nucl_w, pbs_w, rt_w = _lane_offset_tables(nucl_tbl, pbs_tbl, rt_tbl)

    ws = _vmem_working_set_bytes(tb, L, D)
    vmem_limit = int(min(32 << 20, max(16 << 20, ws + (4 << 20))))

    return pl.pallas_call(
        annot_embed_kernel,
        out_shape=jax.ShapeDtypeStruct((B, L, D), jnp.float32),
        grid_spec=pltpu.PrefetchScalarGridSpec(
            num_scalar_prefetch=0,
            grid=grid,
            in_specs=[
                pl.BlockSpec((tb, L), lambda b: (b, 0)),       # seq ids
                pl.BlockSpec((tb, 2), lambda b: (b, 0)),       # packed pbs/rt features
                pl.BlockSpec((6, D), lambda b: (0, 0)),        # nucl table (resident)
                pl.BlockSpec((2, D), lambda b: (0, 0)),        # pbs table  (resident)
                pl.BlockSpec((2, D), lambda b: (0, 0)),        # rt table   (resident)
            ],
            out_specs=pl.BlockSpec((tb, L, D), lambda b: (b, 0, 0)),
        ),
        compiler_params=pltpu.CompilerParams(
            dimension_semantics=("parallel",),
            vmem_limit_bytes=vmem_limit),
    )(seq_i, feats, nucl_w, pbs_w, rt_w)


# ----------------------------- reference -----------------------------

def reference(seq, pbs_feat, rt_feat, nucl_tbl, pbs_tbl, rt_tbl):
    B, L = seq.shape
    n = nucl_tbl[seq]                                             # (B, L, nucl_dim)
    p = pbs_tbl[(pbs_feat > 0.5).astype(jnp.int32)]               # (B, spec_dim)
    r = rt_tbl[(rt_feat > 0.5).astype(jnp.int32)]                 # (B, spec_dim)
    p = jnp.broadcast_to(p[:, None, :], (B, L, p.shape[-1]))
    r = jnp.broadcast_to(r[:, None, :], (B, L, r.shape[-1]))
    return jnp.concatenate([n, p, r], axis=-1)


# ----------------------------- demo / check -----------------------------

if __name__ == "__main__":
    nucl_dim, spec_dim = 32, 16

    key = jax.random.PRNGKey(0)
    k1, k2, k3, k4, k5, k6 = jax.random.split(key, 6)

    # nn.Embedding default init ~ N(0, 1); padding_idx=5 ('N') row is zeroed.
    nucl_tbl = jax.random.normal(k1, (6, nucl_dim), jnp.float32)
    nucl_tbl = nucl_tbl.at[5].set(0.0)
    pbs_tbl = jax.random.normal(k2, (2, spec_dim), jnp.float32)
    rt_tbl = jax.random.normal(k3, (2, spec_dim), jnp.float32)

    D = nucl_dim + 2 * spec_dim

    # --- case 1: small spec-sized shapes (B=2, L=8), single grid step ---
    B, L = 2, 8
    seq = jax.random.randint(k4, (B, L), 0, 6, jnp.int32)
    pbs_feat = jax.random.uniform(k5, (B,), jnp.float32)
    rt_feat = jax.random.uniform(k6, (B,), jnp.float32)

    out = annot_embedder(seq, pbs_feat, rt_feat, nucl_tbl, pbs_tbl, rt_tbl)
    out = jax.block_until_ready(out)
    ref = reference(seq, pbs_feat, rt_feat, nucl_tbl, pbs_tbl, rt_tbl)
    assert out.shape == (B, L, D)
    assert out.dtype == jnp.float32
    assert jnp.allclose(out, ref, atol=1e-6, rtol=1e-6)

    # --- case 2: multi-step grid (explicit tb < B) ---
    B2, L2 = 48, 16
    k7, k8, k9 = jax.random.split(jax.random.PRNGKey(1), 3)
    seq2 = jax.random.randint(k7, (B2, L2), 0, 6, jnp.int32)
    pbs2 = jax.random.uniform(k8, (B2,), jnp.float32)
    rt2 = jax.random.uniform(k9, (B2,), jnp.float32)

    out2 = annot_embedder(seq2, pbs2, rt2, nucl_tbl, pbs_tbl, rt_tbl, tb=16)
    out2 = jax.block_until_ready(out2)
    ref2 = reference(seq2, pbs2, rt2, nucl_tbl, pbs_tbl, rt_tbl)
    assert jnp.allclose(out2, ref2, atol=1e-6, rtol=1e-6)

    # --- case 3: partial last grid block (B % tb != 0) -> overhanging reads are benign ---
    B3, L3 = 20, 16
    k10, k11, k12 = jax.random.split(jax.random.PRNGKey(2), 3)
    seq3 = jax.random.randint(k10, (B3, L3), 0, 6, jnp.int32)
    pbs3 = jax.random.uniform(k11, (B3,), jnp.float32)
    rt3 = jax.random.uniform(k12, (B3,), jnp.float32)

    out3 = annot_embedder(seq3, pbs3, rt3, nucl_tbl, pbs_tbl, rt_tbl, tb=8)
    out3 = jax.block_until_ready(out3)
    ref3 = reference(seq3, pbs3, rt3, nucl_tbl, pbs_tbl, rt_tbl)
    assert jnp.allclose(out3, ref3, atol=1e-6, rtol=1e-6)

    print("KERNEL_OK")
</pallas_src>

<mosaic_0001>
module attributes {stable_mosaic.version = 11 : i64} {
  func.func @annot_embed_kernel(%arg0: i32, %arg1: memref<2x8xi32, #tpu.memory_space<vmem>>, %arg2: memref<2x2xf32, #tpu.memory_space<vmem>>, %arg3: memref<6x64xf32, #tpu.memory_space<vmem>>, %arg4: memref<2x64xf32, #tpu.memory_space<vmem>>, %arg5: memref<2x64xf32, #tpu.memory_space<vmem>>, %arg6: memref<2x8x64xf32, #tpu.memory_space<vmem>>) attributes {dimension_semantics = [#tpu.dimension_semantics<parallel>], iteration_bounds = array<i64: 1>, scalar_prefetch = 0 : i64, scratch_operands = 0 : i64, tpu.core_type = #tpu.core_type<tc>, window_params = [{transform_indices = @transform_0, window_bounds = array<i64: 2, 8>}, {transform_indices = @transform_1, window_bounds = array<i64: 2, 2>}, {pipeline_mode = #tpu.pipeline_mode<synchronous>, transform_indices = @transform_2, window_bounds = array<i64: 6, 64>}, {pipeline_mode = #tpu.pipeline_mode<synchronous>, transform_indices = @transform_3, window_bounds = array<i64: 2, 64>}, {pipeline_mode = #tpu.pipeline_mode<synchronous>, transform_indices = @transform_4, window_bounds = array<i64: 2, 64>}, {transform_indices = @transform_5, window_bounds = array<i64: 2, 8, 64>}]} {
    %c0 = arith.constant 0 : index
    %c0_0 = arith.constant 0 : index
    %0 = vector.load %arg1[%c0, %c0_0] : memref<2x8xi32, #tpu.memory_space<vmem>>, vector<2x8xi32>
    %1 = vector.shape_cast %0 : vector<2x8xi32> to vector<2x8x1xi32>
    %2 = vector.shape_cast %1 : vector<2x8x1xi32> to vector<2x8x1xi32>
    %3 = vector.broadcast %2 : vector<2x8x1xi32> to vector<2x8x64xi32>
    %cst = arith.constant 0.000000e+00 : f32
    %4 = vector.broadcast %cst : f32 to vector<2x8x64xf32>
    %c0_i32 = arith.constant 0 : i32
    %5 = vector.broadcast %c0_i32 : i32 to vector<2x8x64xi32>
    %6 = arith.cmpi eq, %3, %5 : vector<2x8x64xi32>
    %c0_1 = arith.constant 0 : index
    %c0_2 = arith.constant 0 : index
    %7 = vector.load %arg3[%c0_1, %c0_2] : memref<6x64xf32, #tpu.memory_space<vmem>>, vector<1x64xf32>
    %8 = vector.shape_cast %7 : vector<1x64xf32> to vector<1x1x64xf32>
    %9 = vector.shape_cast %8 : vector<1x1x64xf32> to vector<1x1x64xf32>
    %10 = vector.broadcast %9 : vector<1x1x64xf32> to vector<2x8x64xf32>
    %11 = arith.select %6, %10, %4 : vector<2x8x64xi1>, vector<2x8x64xf32>
    %c1_i32 = arith.constant 1 : i32
    %12 = vector.broadcast %c1_i32 : i32 to vector<2x8x64xi32>
    %13 = arith.cmpi eq, %3, %12 : vector<2x8x64xi32>
    %c1 = arith.constant 1 : index
    %c0_3 = arith.constant 0 : index
    %14 = vector.load %arg3[%c1, %c0_3] : memref<6x64xf32, #tpu.memory_space<vmem>>, vector<1x64xf32>
    %15 = vector.shape_cast %14 : vector<1x64xf32> to vector<1x1x64xf32>
    %16 = vector.shape_cast %15 : vector<1x1x64xf32> to vector<1x1x64xf32>
    %17 = vector.broadcast %16 : vector<1x1x64xf32> to vector<2x8x64xf32>
    %18 = arith.select %13, %17, %11 : vector<2x8x64xi1>, vector<2x8x64xf32>
    %c2_i32 = arith.constant 2 : i32
    %19 = vector.broadcast %c2_i32 : i32 to vector<2x8x64xi32>
    %20 = arith.cmpi eq, %3, %19 : vector<2x8x64xi32>
    %c2 = arith.constant 2 : index
    %c0_4 = arith.constant 0 : index
    %21 = vector.load %arg3[%c2, %c0_4] : memref<6x64xf32, #tpu.memory_space<vmem>>, vector<1x64xf32>
    %22 = vector.shape_cast %21 : vector<1x64xf32> to vector<1x1x64xf32>
    %23 = vector.shape_cast %22 : vector<1x1x64xf32> to vector<1x1x64xf32>
    %24 = vector.broadcast %23 : vector<1x1x64xf32> to vector<2x8x64xf32>
    %25 = arith.select %20, %24, %18 : vector<2x8x64xi1>, vector<2x8x64xf32>
    %c3_i32 = arith.constant 3 : i32
    %26 = vector.broadcast %c3_i32 : i32 to vector<2x8x64xi32>
    %27 = arith.cmpi eq, %3, %26 : vector<2x8x64xi32>
    %c3 = arith.constant 3 : index
    %c0_5 = arith.constant 0 : index
    %28 = vector.load %arg3[%c3, %c0_5] : memref<6x64xf32, #tpu.memory_space<vmem>>, vector<1x64xf32>
    %29 = vector.shape_cast %28 : vector<1x64xf32> to vector<1x1x64xf32>
    %30 = vector.shape_cast %29 : vector<1x1x64xf32> to vector<1x1x64xf32>
    %31 = vector.broadcast %30 : vector<1x1x64xf32> to vector<2x8x64xf32>
    %32 = arith.select %27, %31, %25 : vector<2x8x64xi1>, vector<2x8x64xf32>
    %c4_i32 = arith.constant 4 : i32
    %33 = vector.broadcast %c4_i32 : i32 to vector<2x8x64xi32>
    %34 = arith.cmpi eq, %3, %33 : vector<2x8x64xi32>
    %c4 = arith.constant 4 : index
    %c0_6 = arith.constant 0 : index
    %35 = vector.load %arg3[%c4, %c0_6] : memref<6x64xf32, #tpu.memory_space<vmem>>, vector<1x64xf32>
    %36 = vector.shape_cast %35 : vector<1x64xf32> to vector<1x1x64xf32>
    %37 = vector.shape_cast %36 : vector<1x1x64xf32> to vector<1x1x64xf32>
    %38 = vector.broadcast %37 : vector<1x1x64xf32> to vector<2x8x64xf32>
    %39 = arith.select %34, %38, %32 : vector<2x8x64xi1>, vector<2x8x64xf32>
    %c5_i32 = arith.constant 5 : i32
    %40 = vector.broadcast %c5_i32 : i32 to vector<2x8x64xi32>
    %41 = arith.cmpi eq, %3, %40 : vector<2x8x64xi32>
    %c5 = arith.constant 5 : index
    %c0_7 = arith.constant 0 : index
    %42 = vector.load %arg3[%c5, %c0_7] : memref<6x64xf32, #tpu.memory_space<vmem>>, vector<1x64xf32>
    %43 = vector.shape_cast %42 : vector<1x64xf32> to vector<1x1x64xf32>
    %44 = vector.shape_cast %43 : vector<1x1x64xf32> to vector<1x1x64xf32>
    %45 = vector.broadcast %44 : vector<1x1x64xf32> to vector<2x8x64xf32>
    %46 = arith.select %41, %45, %39 : vector<2x8x64xi1>, vector<2x8x64xf32>
    %c0_8 = arith.constant 0 : index
    %c0_9 = arith.constant 0 : index
    %47 = vector.load %arg2[%c0_8, %c0_9] : memref<2x2xf32, #tpu.memory_space<vmem>>, vector<2x2xf32>
    %48 = vector.extract_strided_slice %47 {offsets = [0, 0], sizes = [2, 1], strides = [1, 1]} : vector<2x2xf32> to vector<2x1xf32>
    %cst_10 = arith.constant 5.000000e-01 : f32
    %49 = vector.broadcast %cst_10 : f32 to vector<2x1xf32>
    %50 = arith.cmpf ogt, %48, %49 : vector<2x1xf32>
    %51 = vector.shape_cast %50 : vector<2x1xi1> to vector<2x1x1xi1>
    %52 = vector.extract_strided_slice %47 {offsets = [0, 1], sizes = [2, 1], strides = [1, 1]} : vector<2x2xf32> to vector<2x1xf32>
    %cst_11 = arith.constant 5.000000e-01 : f32
    %53 = vector.broadcast %cst_11 : f32 to vector<2x1xf32>
    %54 = arith.cmpf ogt, %52, %53 : vector<2x1xf32>
    %55 = vector.shape_cast %54 : vector<2x1xi1> to vector<2x1x1xi1>
    %c1_12 = arith.constant 1 : index
    %c0_13 = arith.constant 0 : index
    %56 = vector.load %arg4[%c1_12, %c0_13] : memref<2x64xf32, #tpu.memory_space<vmem>>, vector<1x64xf32>
    %57 = vector.shape_cast %56 : vector<1x64xf32> to vector<1x1x64xf32>
    %c0_14 = arith.constant 0 : index
    %c0_15 = arith.constant 0 : index
    %58 = vector.load %arg4[%c0_14, %c0_15] : memref<2x64xf32, #tpu.memory_space<vmem>>, vector<1x64xf32>
    %59 = vector.shape_cast %58 : vector<1x64xf32> to vector<1x1x64xf32>
    %60 = vector.shape_cast %51 : vector<2x1x1xi1> to vector<2x1x1xi1>
    %61 = vector.broadcast %60 : vector<2x1x1xi1> to vector<2x1x64xi1>
    %62 = vector.shape_cast %57 : vector<1x1x64xf32> to vector<1x1x64xf32>
    %63 = vector.broadcast %62 : vector<1x1x64xf32> to vector<2x1x64xf32>
    %64 = vector.shape_cast %59 : vector<1x1x64xf32> to vector<1x1x64xf32>
    %65 = vector.broadcast %64 : vector<1x1x64xf32> to vector<2x1x64xf32>
    %66 = arith.select %61, %63, %65 : vector<2x1x64xi1>, vector<2x1x64xf32>
    %c1_16 = arith.constant 1 : index
    %c0_17 = arith.constant 0 : index
    %67 = vector.load %arg5[%c1_16, %c0_17] : memref<2x64xf32, #tpu.memory_space<vmem>>, vector<1x64xf32>
    %68 = vector.shape_cast %67 : vector<1x64xf32> to vector<1x1x64xf32>
    %c0_18 = arith.constant 0 : index
    %c0_19 = arith.constant 0 : index
    %69 = vector.load %arg5[%c0_18, %c0_19] : memref<2x64xf32, #tpu.memory_space<vmem>>, vector<1x64xf32>
    %70 = vector.shape_cast %69 : vector<1x64xf32> to vector<1x1x64xf32>
    %71 = vector.shape_cast %55 : vector<2x1x1xi1> to vector<2x1x1xi1>
    %72 = vector.broadcast %71 : vector<2x1x1xi1> to vector<2x1x64xi1>
    %73 = vector.shape_cast %68 : vector<1x1x64xf32> to vector<1x1x64xf32>
    %74 = vector.broadcast %73 : vector<1x1x64xf32> to vector<2x1x64xf32>
    %75 = vector.shape_cast %70 : vector<1x1x64xf32> to vector<1x1x64xf32>
    %76 = vector.broadcast %75 : vector<1x1x64xf32> to vector<2x1x64xf32>
    %77 = arith.select %72, %74, %76 : vector<2x1x64xi1>, vector<2x1x64xf32>
    %78 = vector.broadcast %66 : vector<2x1x64xf32> to vector<2x8x64xf32>
    %79 = arith.addf %46, %78 : vector<2x8x64xf32>
    %80 = vector.broadcast %77 : vector<2x1x64xf32> to vector<2x8x64xf32>
    %81 = arith.addf %79, %80 : vector<2x8x64xf32>
    %c0_20 = arith.constant 0 : index
    %c0_21 = arith.constant 0 : index
    %c0_22 = arith.constant 0 : index
    %82 = vector.load %arg6[%c0_20, %c0_21, %c0_22] : memref<2x8x64xf32, #tpu.memory_space<vmem>>, vector<2x8x64xf32>
    tpu.vector_store %arg6[%c0_20, %c0_21, %c0_22], %81 {strides = array<i32>} : memref<2x8x64xf32, #tpu.memory_space<vmem>>, vector<2x8x64xf32>,
    return
  }
  func.func @transform_0(%arg0: i32) -> (i32, i32) {
    %c0_i32 = arith.constant 0 : i32
    %c0_i32_0 = arith.constant 0 : i32
    return %arg0, %c0_i32 : i32, i32
  }
  func.func @transform_1(%arg0: i32) -> (i32, i32) {
    %c0_i32 = arith.constant 0 : i32
    %c0_i32_0 = arith.constant 0 : i32
    return %arg0, %c0_i32 : i32, i32
  }
  func.func @transform_2(%arg0: i32) -> (i32, i32) {
    %c0_i32 = arith.constant 0 : i32
    %c0_i32_0 = arith.constant 0 : i32
    %c0_i32_1 = arith.constant 0 : i32
    return %c0_i32, %c0_i32_0 : i32, i32
  }
  func.func @transform_3(%arg0: i32) -> (i32, i32) {
    %c0_i32 = arith.constant 0 : i32
    %c0_i32_0 = arith.constant 0 : i32
    %c0_i32_1 = arith.constant 0 : i32
    return %c0_i32, %c0_i32_0 : i32, i32
  }
  func.func @transform_4(%arg0: i32) -> (i32, i32) {
    %c0_i32 = arith.constant 0 : i32
    %c0_i32_0 = arith.constant 0 : i32
    %c0_i32_1 = arith.constant 0 : i32
    return %c0_i32, %c0_i32_0 : i32, i32
  }
  func.func @transform_5(%arg0: i32) -> (i32, i32, i32) {
    %c0_i32 = arith.constant 0 : i32
    %c0_i32_0 = arith.constant 0 : i32
    %c0_i32_1 = arith.constant 0 : i32
    return %arg0, %c0_i32, %c0_i32_0 : i32, i32, i32
  }
}

</mosaic_0001>

<llo_original>
// kernel: tpu_custom_call.1
$region0: #{tpu_custom_call.1}
  #allocation0 [shape = 'u32[]', space=smem, size = 0x4, offset = 0x4, fixed_abs, tag = 'smem constant byte address 0x4 - core index']
  #allocation1 [shape = 'u32[144,128]{1,0:T(1,128)}', space=vmem, size = 0x12000, scoped, tag = 'internal scratch']
  %s0 = inlined_call_operand.hbm [shape: s32[2,8], index: 0, kind: input, shape index: {}]
  %s1 = inlined_call_operand.vmem [shape: f32[2,2], index: 1, kind: input, shape index: {}]
  %s2 = inlined_call_operand.hbm [shape: f32[6,64], index: 2, kind: input, shape index: {}]
  %s3 = inlined_call_operand.vmem [shape: f32[2,64], index: 3, kind: input, shape index: {}]
  %s4 = inlined_call_operand.vmem [shape: f32[2,64], index: 4, kind: input, shape index: {}]
  %s5 = inlined_call_operand.hbm [shape: f32[2,8,64], index: 5, kind: output, shape index: {}]
  %s6 = sld [smem:[#allocation0]]
  $region38: #{tpu_custom_call.1} parent=0
    _
  %s8 = ssub.s32 1, %s6
  %s9 = scalar_select 0, %s8, %s6
  $region1: #{tpu_custom_call.1} parent=0
    #allocation2 [shape = 'u8[1024]{0}', space=vmem, size = 0x400, scoped, tag = 'input window, operand 0, single buffered']
    #allocation3 [shape = 's32[1]{0}', space=sflag, size = 0x4, scoped, tag = 'scoped memory for tpu_custom_call.1']
    #allocation4 [shape = 's32[1]{0}', space=sflag, size = 0x4, scoped, tag = 'scoped memory for tpu_custom_call.1']
    #allocation5 [shape = 'u8[4096]{0}', space=vmem, size = 0x1000, scoped, tag = 'input window, operand 2, single buffered']
    #allocation6 [shape = 's32[1]{0}', space=sflag, size = 0x4, scoped, tag = 'scoped memory for tpu_custom_call.1']
    #allocation7 [shape = 'u8[8192]{0}', space=vmem, size = 0x2000, scoped, tag = 'output window, operand 0, single buffered']
    %10 = vsyncpa [#allocation3], 0
    %11 = vsyncpa [#allocation6], 0
    %12 = vsyncpa [#allocation4], 0
    // Predicated region
    $region2: #{tpu_custom_call.1} parent=1 // pred_check
      _
    $region3: #{tpu_custom_call.1} parent=1 // pred_check_branch
      %14 = sbr.rel (0) target = $region5
    $region4: #{tpu_custom_call.1} parent=1 // pred_region
      %s16 = ssub.s32 32, 32
      %17 = vsyncadd [#allocation3], %s16
      %s19 = sshll.u32 [#allocation2], 4
      %s20 = int_to_ptr.vmem [resolvable:$true] %s19
      %22 = dma.hbm_to_vmem [thread:$0]  %s0, 32, %s20, [#allocation3]
    $region5: #{tpu_custom_call.1} parent=1 // pred_fallthru
      _
    // Predicated region
    $region6: #{tpu_custom_call.1} parent=1 // pred_check
      _
    $region7: #{tpu_custom_call.1} parent=1 // pred_check_branch
      %24 = sbr.rel (0) target = $region9
    $region8: #{tpu_custom_call.1} parent=1 // pred_region
      _
    $region9: #{tpu_custom_call.1} parent=1 // pred_fallthru
      _
    // Predicated region
    $region10: #{tpu_custom_call.1} parent=1 // pred_check
      _
    $region11: #{tpu_custom_call.1} parent=1 // pred_check_branch
      %26 = sbr.rel (0) target = $region13
    $region12: #{tpu_custom_call.1} parent=1 // pred_region
      %s28 = ssub.s32 128, 128
      %29 = vsyncadd [#allocation6], %s28
      %s31 = sshll.u32 [#allocation5], 4
      %s32 = int_to_ptr.vmem [resolvable:$true] %s31
      %34 = dma.hbm_to_vmem [thread:$0]  %s2, 128, %s32, [#allocation6]
    $region13: #{tpu_custom_call.1} parent=1 // pred_fallthru
      _
    // Predicated region
    $region14: #{tpu_custom_call.1} parent=1 // pred_check
      _
    $region15: #{tpu_custom_call.1} parent=1 // pred_check_branch
      %36 = sbr.rel (0) target = $region17
    $region16: #{tpu_custom_call.1} parent=1 // pred_region
      _
    $region17: #{tpu_custom_call.1} parent=1 // pred_fallthru
      _
    // Predicated region
    $region18: #{tpu_custom_call.1} parent=1 // pred_check
      _
    $region19: #{tpu_custom_call.1} parent=1 // pred_check_branch
      %38 = sbr.rel (0) target = $region21
    $region20: #{tpu_custom_call.1} parent=1 // pred_region
      _
    $region21: #{tpu_custom_call.1} parent=1 // pred_fallthru
      _
    // Predicated region
    $region22: #{tpu_custom_call.1} parent=1 // pred_check
      _
    $region23: #{tpu_custom_call.1} parent=1 // pred_check_branch
      %40 = sbr.rel (0) target = $region25
    $region24: #{tpu_custom_call.1} parent=1 // pred_region
      %41 = dma.done [#allocation3], 32
    $region25: #{tpu_custom_call.1} parent=1 // pred_fallthru
      _
    // Predicated region
    $region26: #{tpu_custom_call.1} parent=1 // pred_check
      _
    $region27: #{tpu_custom_call.1} parent=1 // pred_check_branch
      %43 = sbr.rel (0) target = $region29
    $region28: #{tpu_custom_call.1} parent=1 // pred_region
      %44 = dma.done [#allocation6], 128
    $region29: #{tpu_custom_call.1} parent=1 // pred_fallthru
      _
    %v45 = vld [vmem:[#allocation2] sm:$0x3]
    %v46 = vlaneseq
    %v47 = vshrl.u32 %v46, 7
    %v48 = vsub.s32 0, %v47
    %v49 = vrot.slane %v45, %v48
    %51 = vbcast.lane.b32.xlu0 %v49, 256
    %v52 = vpop.permute.xlu0 %51
    %v53 = vlaneseq
    %v54 = vshrl.u32 %v53, 7
    %v55 = vsub.s32 1, %v54
    %v56 = vrot.slane %v45, %v55
    %58 = vbcast.lane.b32.xlu0 %v56, 256
    %v59 = vpop.permute.xlu0 %58
    %vm60 = vcmp.eq.s32.totalorder %v52, 0
    %vm61 = vcmp.eq.s32.totalorder %v59, 0
    %v62 = vld [vmem:[#allocation5] sm:$0x1]
    %v63 = vlaneseq
    %v64 = vshrl.u32 %v63, 7
    %v65 = vsub.s32 0, %v64
    %v66 = vrot.slane %v62, %v65
    %v67 = vsel %vm60, %v66, 0.0
    %v68 = vsel %vm61, %v66, 0.0
    %vm69 = vcmp.eq.s32.totalorder %v52, 1
    %vm70 = vcmp.eq.s32.totalorder %v59, 1
    %v71 = vld [vmem:[#allocation5 + $0x1] sm:$0x1]
    %v72 = vlaneseq
    %v73 = vshrl.u32 %v72, 7
    %v74 = vsub.s32 0, %v73
    %v75 = vrot.slane %v71, %v74
    %v76 = vsel %vm69, %v75, %v67
    %v77 = vsel %vm70, %v75, %v68
    %vm78 = vcmp.eq.s32.totalorder %v52, 2
    %vm79 = vcmp.eq.s32.totalorder %v59, 2
    %v80 = vld [vmem:[#allocation5 + $0x2] sm:$0x1]
    %v81 = vlaneseq
    %v82 = vshrl.u32 %v81, 7
    %v83 = vsub.s32 0, %v82
    %v84 = vrot.slane %v80, %v83
    %v85 = vsel %vm78, %v84, %v76
    %v86 = vsel %vm79, %v84, %v77
    %vm87 = vcmp.eq.s32.totalorder %v52, 3
    %vm88 = vcmp.eq.s32.totalorder %v59, 3
    %v89 = vld [vmem:[#allocation5 + $0x3] sm:$0x1]
    %v90 = vlaneseq
    %v91 = vshrl.u32 %v90, 7
    %v92 = vsub.s32 0, %v91
    %v93 = vrot.slane %v89, %v92
    %v94 = vsel %vm87, %v93, %v85
    %v95 = vsel %vm88, %v93, %v86
    %vm96 = vcmp.eq.s32.totalorder %v52, 4
    %vm97 = vcmp.eq.s32.totalorder %v59, 4
    %v98 = vld [vmem:[#allocation5 + $0x4] sm:$0x1]
    %v99 = vlaneseq
    %v100 = vshrl.u32 %v99, 7
    %v101 = vsub.s32 0, %v100
    %v102 = vrot.slane %v98, %v101
    %v103 = vsel %vm96, %v102, %v94
    %v104 = vsel %vm97, %v102, %v95
    %vm105 = vcmp.eq.s32.totalorder %v52, 5
    %vm106 = vcmp.eq.s32.totalorder %v59, 5
    %v107 = vld [vmem:[#allocation5 + $0x5] sm:$0x1]
    %v108 = vlaneseq
    %v109 = vshrl.u32 %v108, 7
    %v110 = vsub.s32 0, %v109
    %v111 = vrot.slane %v107, %v110
    %v112 = vsel %vm105, %v111, %v103
    %v113 = vsel %vm106, %v111, %v104
    %v114 = vld [vmem:[%s1] sm:$0x3]
    %vm115 = vcmp.gt.f32.partialorder %v114, 0.5
    %v116 = vsel %vm115, 1, 0
    %v118 = vunpack.c.l.s4 1966171168
    %v119 = vunpack.c.0.s8 %v118
    %v120 = vlaneseq
    %v121 = vshrl.u32 %v120, 7
    %v122 = vsub.s32 %v119, %v121
    %v123 = vrot.slane %v116, %v122
    %v124 = vcombine.high %v123, %v123
    %v126 = vunpack.c.l.s4 1966171168
    %v127 = vunpack.c.0.s8 %v126
    %v128 = vlaneseq
    %v129 = vshrl.u32 %v128, 7
    %v130 = vsub.s32 %v127, %v129
    %v131 = vrot.slane %v123, %v130
    %v133 = vunpack.c.l.s4 1966171168
    %v134 = vunpack.c.0.s8 %v133
    %v135 = vlaneseq
    %v136 = vshrl.u32 %v135, 7
    %v137 = vsub.s32 %v134, %v136
    %v138 = vrot.slane %v124, %v137
    %vm139 = vcmp.ne.s32.totalorder %v131, 0
    %vm140 = vcmp.ne.s32.totalorder %v138, 0
    %v141 = vld [vmem:[%s3 + $0x1] sm:$0x1]
    %v142 = vld [vmem:[%s3] sm:$0x1]
    %v143 = vsel %vm139, 1, 0
    %v144 = vsel %vm140, 1, 0
    %145 = vset.pattern.permute.xlu0 0
    %146 = vperm.xlu0 %145, %v143
    %v147 = vpop.permute.xlu0 %146
    %v148 = vlaneseq
    %v149 = vshrl.u32 %v148, 7
    %v150 = vsub.s32 0, %v149
    %v151 = vrot.slane %v147, %v150
    %152 = vset.pattern.permute.xlu0 0
    %153 = vperm.xlu0 %152, %v144
    %v154 = vpop.permute.xlu0 %153
    %v155 = vlaneseq
    %v156 = vshrl.u32 %v155, 7
    %v157 = vsub.s32 0, %v156
    %v158 = vrot.slane %v154, %v157
    %vm159 = vcmp.eq.s32.totalorder %v151, 1
    %vm160 = vcmp.eq.s32.totalorder %v158, 1
    %v161 = vsel %vm159, %v141, %v142
    %v162 = vsel %vm160, %v141, %v142
    %v163 = vld [vmem:[%s4 + $0x1] sm:$0x1]
    %v164 = vld [vmem:[%s4] sm:$0x1]
    %165 = vset.pattern.permute.xlu0 1
    %166 = vperm.xlu0 %165, %v143
    %v167 = vpop.permute.xlu0 %166
    %v168 = vlaneseq
    %v169 = vshrl.u32 %v168, 7
    %v170 = vsub.s32 0, %v169
    %v171 = vrot.slane %v167, %v170
    %172 = vset.pattern.permute.xlu0 1
    %173 = vperm.xlu0 %172, %v144
    %v174 = vpop.permute.xlu0 %173
    %v175 = vlaneseq
    %v176 = vshrl.u32 %v175, 7
    %v177 = vsub.s32 0, %v176
    %v178 = vrot.slane %v174, %v177
    %vm179 = vcmp.eq.s32.totalorder %v171, 1
    %vm180 = vcmp.eq.s32.totalorder %v178, 1
    %v181 = vsel %vm179, %v163, %v164
    %v182 = vsel %vm180, %v163, %v164
    %v183 = vlaneseq
    %v184 = vshrl.u32 %v183, 7
    %v185 = vsub.s32 0, %v184
    %v186 = vrot.slane %v161, %v185
    %v187 = vlaneseq
    %v188 = vshrl.u32 %v187, 7
    %v189 = vsub.s32 0, %v188
    %v190 = vrot.slane %v162, %v189
    %v191 = vadd.f32 %v112, %v186
    %v192 = vadd.f32 %v113, %v190
    %v193 = vlaneseq
    %v194 = vshrl.u32 %v193, 7
    %v195 = vsub.s32 0, %v194
    %v196 = vrot.slane %v181, %v195
    %v197 = vlaneseq
    %v198 = vshrl.u32 %v197, 7
    %v199 = vsub.s32 0, %v198
    %v200 = vrot.slane %v182, %v199
    %v201 = vadd.f32 %v191, %v196
    %v202 = vadd.f32 %v192, %v200
    %vm203 = vcmask 523264
    %204 = vst.msk [vmem:[#allocation7] sm:$0xff] %vm203, %v201
    %205 = vst.msk [vmem:[#allocation7 + $0x8] sm:$0xff] %vm203, %v202
    // Predicated region
    $region30: #{tpu_custom_call.1} parent=1 // pred_check
      _
    $region31: #{tpu_custom_call.1} parent=1 // pred_check_branch
      %207 = sbr.rel (0) target = $region33
    $region32: #{tpu_custom_call.1} parent=1 // pred_region
      %s209 = ssub.s32 256, 256
      %210 = vsyncadd [#allocation4], %s209
      %s211 = sshll.u32 [#allocation7], 4
      %s212 = int_to_ptr.vmem [resolvable:$true] %s211
      %217 = dma.vmem_to_hbm [thread:$0]  %s212, 256, %s5, [#allocation4], 128, 128, 8
    $region33: #{tpu_custom_call.1} parent=1 // pred_fallthru
      _
    // Predicated region
    $region34: #{tpu_custom_call.1} parent=1 // pred_check
      _
    $region35: #{tpu_custom_call.1} parent=1 // pred_check_branch
      %219 = sbr.rel (0) target = $region37
    $region36: #{tpu_custom_call.1} parent=1 // pred_region
      %220 = dma.done [#allocation4], 256
    $region37: #{tpu_custom_call.1} parent=1 // pred_fallthru
      _
    %221 = vsyncpa [#allocation3], 1
    %222 = vsyncpa [#allocation6], 1
    %223 = vsyncpa [#allocation4], 1

</llo_original>
